<compile_context>
chip_gen: v5e
topology: v5e:2x2
jax: 0.10.0
libtpu: 0.0.40
codegen_flags: <defaults>
</compile_context>

<pallas_src>
import functools

import jax
import jax.numpy as jnp
from jax.experimental import pallas as pl
from jax.experimental.pallas import tpu as pltpu


def _lrn_kernel(x_ref, o_ref, *scratch, size, alpha, beta, k):
    # x_ref / o_ref: (C, TL) block -- one batch element, one lane tile.
    xf = x_ref[...].astype(jnp.float32)
    x2 = xf * xf
    C, TL = x2.shape
    left = size // 2            # neighbours below c included in the window
    right = (size - 1) // 2     # neighbours above c included in the window

    if size == 1:
        acc = x2
    else:
        # Zero-channel-padded squares in VMEM; the window sum is `size-1`
        # shifted reads accumulated in registers (pure VPU adds, no matmul,
        # no per-iteration concatenate/pad temporaries).
        x2p = scratch[0]                                   # (left+C+right, TL) f32
        if left > 0:
            x2p[pl.ds(0, left), :] = jnp.zeros((left, TL), jnp.float32)
        if right > 0:
            x2p[pl.ds(left + C, right), :] = jnp.zeros((right, TL), jnp.float32)
        x2p[pl.ds(left, C), :] = x2
        acc = x2
        for d in range(1, right + 1):                      # adds x2[c + d]
            acc = acc + x2p[pl.ds(left + d, C), :]
        for d in range(1, left + 1):                       # adds x2[c - d]
            acc = acc + x2p[pl.ds(left - d, C), :]

    base = k + (alpha / size) * acc
    if beta == 0.75:
        # base**(-0.75) == rsqrt(base * sqrt(base)); EUP only, no exp/log pow.
        denom = jax.lax.rsqrt(base * jnp.sqrt(base))
    elif beta == 0.5:
        denom = jax.lax.rsqrt(base)
    else:
        denom = jnp.exp(-beta * jnp.log(base))             # base > 0 for k > 0
    o_ref[...] = (xf * denom).astype(o_ref.dtype)


def _vmem_capacity_bytes():
    try:
        cap = getattr(pltpu.get_tpu_info(), "vmem_capacity_bytes", None)
        if cap:
            return int(cap)
    except Exception:
        pass
    return 64 * 1024 * 1024        # conservative default (v7x per-TensorCore)


def _choose_lane_tile(C, hw, n_batch, f32_block_bytes):
    """Lane tile TL: multiple of 128 (or == hw), ~f32_block_bytes per block."""
    lane = 128
    hw_lanes = -(-hw // lane) * lane
    tl = max(lane, (f32_block_bytes // max(C * 4, 1)) // lane * lane)
    tl = min(tl, hw_lanes)
    # Occupancy: aim for >= 8 total grid steps when the shape allows it (keeps
    # both v7x TensorCores busy at small batch) without shrinking blocks below
    # ~512 lanes (roofline territory per measured sweeps).
    tiles = -(-hw // tl)
    while n_batch * tiles < 8 and tl > 512:
        tl = max(512, ((tl // 2) // lane) * lane)
        tiles = -(-hw // tl)
    if tl >= hw:
        tl = hw                    # full-extent block: always legal, no ragged tile
    return tl


def local_response_norm(x, size, alpha=1e-4, beta=0.75, k=1.0):
    """LRN over the channel axis (dim 1). x: (N, C, *spatial)."""
    orig_shape = x.shape
    N, C = int(orig_shape[0]), int(orig_shape[1])
    hw = 1
    for s in orig_shape[2:]:
        hw *= int(s)
    x3 = x.reshape(N, C, hw)
    size = int(size)

    vmem_cap = _vmem_capacity_bytes()
    # Total live set is ~9-10 f32 blocks (double-buffered in/out + scratch +
    # in-kernel temporaries), so target ~cap/20 per block, clamped to [1, 8] MiB.
    f32_block_bytes = max(1 << 20, min(8 << 20, vmem_cap // 20))
    tl = _choose_lane_tile(C, hw, N, f32_block_bytes)
    num_tiles = -(-hw // tl)

    kernel = functools.partial(_lrn_kernel, size=size, alpha=float(alpha),
                               beta=float(beta), k=float(k))
    scratch_shapes = []
    if size > 1:
        scratch_shapes.append(pltpu.VMEM((C + size - 1, tl), jnp.float32))

    itemsize = jnp.dtype(x.dtype).itemsize
    total = N * C * hw
    cost = pl.CostEstimate(flops=(size + 5) * total,
                           transcendentals=2 * total,
                           bytes_accessed=2 * total * itemsize)

    out = pl.pallas_call(
        kernel,
        out_shape=jax.ShapeDtypeStruct((N, C, hw), x.dtype),
        grid_spec=pltpu.PrefetchScalarGridSpec(
            num_scalar_prefetch=0,
            grid=(N, num_tiles),
            in_specs=[pl.BlockSpec((None, C, tl), lambda n, t: (n, 0, t))],
            out_specs=pl.BlockSpec((None, C, tl), lambda n, t: (n, 0, t)),
            scratch_shapes=scratch_shapes,
        ),
        compiler_params=pltpu.CompilerParams(
            dimension_semantics=("parallel", "parallel"),
            vmem_limit_bytes=int(vmem_cap * 0.7),
        ),
        cost_estimate=cost,
    )(x3)
    return out.reshape(orig_shape)


def _reference_lrn(x, size, alpha=1e-4, beta=0.75, k=1.0):
    """Plain-JAX reference matching torch.nn.functional.local_response_norm."""
    xf = x.astype(jnp.float32)
    x2 = xf * xf
    C = x.shape[1]
    left = size // 2
    right = (size - 1) // 2
    pad_cfg = [(0, 0)] * x.ndim
    pad_cfg[1] = (left, right)
    x2p = jnp.pad(x2, pad_cfg)
    acc = jnp.zeros_like(x2)
    for i in range(size):
        acc = acc + jax.lax.slice_in_dim(x2p, i, i + C, axis=1)
    denom = (k + (alpha / size) * acc) ** beta
    return (xf / denom).astype(x.dtype)


if __name__ == "__main__":
    # Module config (nn.LocalResponseNorm(size=2) style, defaults otherwise).
    SIZE, ALPHA, BETA, K = 2, 1e-4, 0.75, 1.0

    key = jax.random.PRNGKey(0)
    x = jax.random.normal(key, (2, 4, 16, 16), dtype=jnp.float32)

    out = local_response_norm(x, SIZE, ALPHA, BETA, K)
    out = jax.block_until_ready(out)

    ref = _reference_lrn(x, SIZE, ALPHA, BETA, K)
    assert out.shape == x.shape and out.dtype == x.dtype
    assert jnp.allclose(out, ref, atol=1e-5, rtol=1e-5), "mismatch vs reference"

    # Odd window size + spatial extent (49) that is not a multiple of 128.
    x2 = jax.random.normal(jax.random.PRNGKey(1), (2, 8, 7, 7), dtype=jnp.float32)
    out2 = jax.block_until_ready(local_response_norm(x2, 3))
    assert jnp.allclose(out2, _reference_lrn(x2, 3), atol=1e-5, rtol=1e-5)

    print("KERNEL_OK")
</pallas_src>

<mosaic_0001>
module attributes {stable_mosaic.version = 11 : i64} {
  func.func @_lrn_kernel(%arg0: i32, %arg1: i32, %arg2: memref<1x4x256xf32, #tpu.memory_space<vmem>>, %arg3: memref<1x4x256xf32, #tpu.memory_space<vmem>>, %arg4: memref<5x256xf32, #tpu.memory_space<vmem>>) attributes {dimension_semantics = [#tpu.dimension_semantics<parallel>, #tpu.dimension_semantics<parallel>], iteration_bounds = array<i64: 2, 1>, scalar_prefetch = 0 : i64, scratch_operands = 1 : i64, tpu.core_type = #tpu.core_type<tc>, window_params = [{transform_indices = @transform_0, window_bounds = array<i64: 1, 4, 256>}, {transform_indices = @transform_1, window_bounds = array<i64: 1, 4, 256>}]} {
    %c0 = arith.constant 0 : index
    %c0_0 = arith.constant 0 : index
    %c0_1 = arith.constant 0 : index
    %0 = vector.load %arg2[%c0, %c0_0, %c0_1] : memref<1x4x256xf32, #tpu.memory_space<vmem>>, vector<1x4x256xf32>
    %1 = vector.shape_cast %0 : vector<1x4x256xf32> to vector<4x256xf32>
    %2 = arith.mulf %1, %1 : vector<4x256xf32>
    %cst = arith.constant 0.000000e+00 : f32
    %3 = vector.broadcast %cst : f32 to vector<1x256xf32>
    %c0_2 = arith.constant 0 : index
    %c0_3 = arith.constant 0 : index
    %4 = vector.load %arg4[%c0_2, %c0_3] : memref<5x256xf32, #tpu.memory_space<vmem>>, vector<1x256xf32>
    tpu.vector_store %arg4[%c0_2, %c0_3], %3 {strides = array<i32>} : memref<5x256xf32, #tpu.memory_space<vmem>>, vector<1x256xf32>,
    %c1 = arith.constant 1 : index
    %c0_4 = arith.constant 0 : index
    %5 = vector.load %arg4[%c1, %c0_4] : memref<5x256xf32, #tpu.memory_space<vmem>>, vector<4x256xf32>
    tpu.vector_store %arg4[%c1, %c0_4], %2 {strides = array<i32>} : memref<5x256xf32, #tpu.memory_space<vmem>>, vector<4x256xf32>,
    %c0_5 = arith.constant 0 : index
    %c0_6 = arith.constant 0 : index
    %6 = vector.load %arg4[%c0_5, %c0_6] : memref<5x256xf32, #tpu.memory_space<vmem>>, vector<4x256xf32>
    %7 = arith.addf %2, %6 : vector<4x256xf32>
    %cst_7 = arith.constant 5.000000e-05 : f32
    %8 = vector.broadcast %cst_7 : f32 to vector<4x256xf32>
    %9 = arith.mulf %8, %7 : vector<4x256xf32>
    %cst_8 = arith.constant 1.000000e+00 : f32
    %10 = vector.broadcast %cst_8 : f32 to vector<4x256xf32>
    %11 = arith.addf %10, %9 : vector<4x256xf32>
    %12 = math.sqrt %11 : vector<4x256xf32>
    %13 = arith.mulf %11, %12 : vector<4x256xf32>
    %14 = math.rsqrt %13 : vector<4x256xf32>
    %15 = arith.mulf %1, %14 : vector<4x256xf32>
    %c0_9 = arith.constant 0 : index
    %c0_10 = arith.constant 0 : index
    %c0_11 = arith.constant 0 : index
    %16 = vector.load %arg3[%c0_9, %c0_10, %c0_11] : memref<1x4x256xf32, #tpu.memory_space<vmem>>, vector<1x4x256xf32>
    %17 = vector.shape_cast %16 : vector<1x4x256xf32> to vector<4x256xf32>
    %18 = vector.shape_cast %15 : vector<4x256xf32> to vector<1x4x256xf32>
    tpu.vector_store %arg3[%c0_9, %c0_10, %c0_11], %18 {strides = array<i32>} : memref<1x4x256xf32, #tpu.memory_space<vmem>>, vector<1x4x256xf32>,
    return
  }
  func.func @transform_0(%arg0: i32, %arg1: i32) -> (i32, i32, i32) {
    %c0_i32 = arith.constant 0 : i32
    %c0_i32_0 = arith.constant 0 : i32
    return %arg0, %c0_i32, %arg1 : i32, i32, i32
  }
  func.func @transform_1(%arg0: i32, %arg1: i32) -> (i32, i32, i32) {
    %c0_i32 = arith.constant 0 : i32
    %c0_i32_0 = arith.constant 0 : i32
    return %arg0, %c0_i32, %arg1 : i32, i32, i32
  }
}

</mosaic_0001>

<llo_original>
// kernel: tpu_custom_call.1
$region0: #{tpu_custom_call.1}
  #allocation0 [shape = 'u32[]', space=smem, size = 0x4, offset = 0x4, fixed_abs, tag = 'smem constant byte address 0x4 - core index']
  #allocation1 [shape = 'u32[72,128]{1,0:T(1,128)}', space=vmem, size = 0x9000, scoped, tag = 'internal scratch']
  #allocation2 [shape = 'f32[5,256]{1,0:T(8,128)}', space=vmem, size = 0x2000, scoped, tag = 'scratch operand']
  %s0 = inlined_call_operand.hbm [shape: f32[2,4,256], index: 0, kind: input, shape index: {}]
  %s1 = inlined_call_operand.hbm [shape: f32[2,4,256], index: 1, kind: output, shape index: {}]
  %s2 = sld [smem:[#allocation0]]
  $region41: #{tpu_custom_call.1} parent=0
    _
  %s4 = ssub.s32 1, %s2
  %s5 = scalar_select 0, %s4, %s2
  $region1: #{tpu_custom_call.1} parent=0
    #allocation3 [shape = 'u8[8192]{0}', space=vmem, size = 0x2000, scoped, tag = 'input window, operand 0']
    #allocation4 [shape = 's32[2]{0}', space=sflag, size = 0x8, scoped, tag = 'scoped memory for tpu_custom_call.1']
    #allocation5 [shape = 's32[2]{0}', space=sflag, size = 0x8, scoped, tag = 'scoped memory for tpu_custom_call.1']
    #allocation6 [shape = 'u8[8192]{0}', space=vmem, size = 0x2000, scoped, tag = 'output window, operand 0']
    %6 = vsyncpa [#allocation4], 0
    %s7 = scalar_lea.sflag [#allocation4], 1
    %8 = vsyncpa %s7, 0
    %9 = vsyncpa [#allocation5], 0
    %s10 = scalar_lea.sflag [#allocation5], 1
    %11 = vsyncpa %s10, 0
    loop: start=0, step=1, limit=4
    $region2: #{tpu_custom_call.1} parent=1 // loop_pre_header
      _
    $region3: #{tpu_custom_call.1} parent=1 // loop_header
      %s13 = sphi 0, %s17
      %p14 = scmp.ge.s32.totalorder %s13, 4
      %s20 = sphi 0, %s32
      %s21 = sphi 0, %s28
      %s22 = sphi 0, %s20
      %s23 = sphi 0, %s21
      %s24 = sphi 0, %s22
      %s25 = sphi 0, %s23
      %s37 = sphi 0, %s39
      %s40 = sphi 0, %s37
      %s41 = sphi 0, %s40
      %s57 = sphi 0, %s41
      %s65 = sphi 0, %s67
      %s68 = sphi 0, %s65
      %s69 = sphi 0, %s68
      %s85 = sphi 0, %s69
    $region4: #{tpu_custom_call.1} parent=1 // loop_header_branch
      %16 = sbr.rel (%p14) target = $region8
    $region5: #{tpu_custom_call.1} parent=1 // loop_body
      %s18 = ssub.s32 %s13, 1
      %s19 = ssub.s32 %s13, 2
      %s26 = sadd.s32 1, %s21
      %p27 = scmp.ge.s32.totalorder %s26, 1
      %s28 = scalar_select %p27, 0, %s26
      %s29 = sadd.s32 1, %s20
      %s30 = scalar_select %p27, %s29, %s20
      %p31 = scmp.ge.s32.totalorder %s30, 2
      %s32 = scalar_select %p31, 0, %s30
      %s33 = ssub.s32 %s20, %s32
      %s34 = ssub.s32 %s21, %s28
      %s35 = sor.u32 %s33, %s34
      %p36 = scmp.eq.s32.totalorder %s35, 0
      %s38 = sadd.s32 %s37, 1
      %s39 = scalar_select %p36, %s37, %s38
      %p42 = pneg %p36
      %p43 = scmp.eq.s32.totalorder %s13, 1
      %p44 = por %p42, %p43
      %p45 = scmp.ne.s32.totalorder %s37, %s40
      %p46 = scmp.eq.s32.totalorder %s13, 0
      %p47 = por %p45, %p46
      %p48 = scmp.ne.s32.totalorder %s37, %s40
      %p49 = scmp.eq.s32.totalorder %s18, 1
      %p50 = por %p48, %p49
      %p51 = scmp.ne.s32.totalorder %s40, %s41
      %p52 = scmp.eq.s32.totalorder %s18, 0
      %p53 = por %p51, %p52
      %p54 = scmp.ne.s32.totalorder %s40, %s41
      %p55 = scmp.eq.s32.totalorder %s19, 1
      %p56 = por %p54, %p55
      %p58 = scmp.ne.s32.totalorder %s41, %s57
      %p59 = scmp.eq.s32.totalorder %s19, 0
      %p60 = por %p58, %p59
      %s61 = ssub.s32 %s20, %s32
      %s62 = ssub.s32 %s21, %s28
      %s63 = sor.u32 %s61, %s62
      %p64 = scmp.eq.s32.totalorder %s63, 0
      %s66 = sadd.s32 %s65, 1
      %s67 = scalar_select %p64, %s65, %s66
      %p70 = pneg %p64
      %p71 = scmp.eq.s32.totalorder %s13, 1
      %p72 = por %p70, %p71
      %p73 = scmp.ne.s32.totalorder %s65, %s68
      %p74 = scmp.eq.s32.totalorder %s13, 0
      %p75 = por %p73, %p74
      %p76 = scmp.ne.s32.totalorder %s65, %s68
      %p77 = scmp.eq.s32.totalorder %s18, 1
      %p78 = por %p76, %p77
      %p79 = scmp.ne.s32.totalorder %s68, %s69
      %p80 = scmp.eq.s32.totalorder %s18, 0
      %p81 = por %p79, %p80
      %p82 = scmp.ne.s32.totalorder %s68, %s69
      %p83 = scmp.eq.s32.totalorder %s19, 1
      %p84 = por %p82, %p83
      %p86 = scmp.ne.s32.totalorder %s69, %s85
      %p87 = scmp.eq.s32.totalorder %s19, 0
      %p88 = por %p86, %p87
      %p89 = scmp.le.s32.totalorder 1, %s13
      %p90 = scmp.lt.s32.totalorder %s13, 3
      %p91 = pnand %p89, %p90
      %p92 = pneg %p91
      // Predicated region
      $region9: #{tpu_custom_call.1} parent=5 // pred_check
        _
      $region10: #{tpu_custom_call.1} parent=5 // pred_check_branch
        %94 = sbr.rel (%p91) target = $region12
      $region11: #{tpu_custom_call.1} parent=5 // pred_region
        %s95 = ssub.s32 %s13, 1
      $region12: #{tpu_custom_call.1} parent=5 // pred_fallthru
        _
      %p96 = scmp.lt.s32.totalorder %s13, 2
      // Predicated region
      $region13: #{tpu_custom_call.1} parent=5 // pred_check
        %p97 = pneg %p96
      $region14: #{tpu_custom_call.1} parent=5 // pred_check_branch
        %99 = sbr.rel (%p97) target = $region16
      $region15: #{tpu_custom_call.1} parent=5 // pred_region
        // Predicated region
        $region17: #{tpu_custom_call.1} parent=15 // pred_check
          %p100 = pneg %p47
        $region18: #{tpu_custom_call.1} parent=15 // pred_check_branch
          %102 = sbr.rel (%p100) target = $region20
        $region19: #{tpu_custom_call.1} parent=15 // pred_region
          %s103 = sand.u32 %s37, 1
          %s104 = scalar_lea.sflag [#allocation4], %s103
          %s105 = sand.u32 %s37, 1
          %s106 = smul.addr %s105, 8
          %s107 = scalar_lea.vmem [#allocation3], %s106
          %s108 = smul.u32 2, %s21
          %110 = vsyncadd %s104, 0
          %s111 = smul.addr %s20, 2
          %s112 = sadd.s32 %s108, %s111
          %s113 = smul.addr %s112, 4
          %s114 = scalar_lea.hbm %s0, %s113
          %s116 = sshll.u32 %s114, 4
          %s117 = int_to_ptr.hbm [resolvable:$true] %s116
          %s118 = sshll.u32 %s107, 4
          %s119 = int_to_ptr.vmem [resolvable:$true] %s118
          %121 = dma.hbm_to_vmem [thread:$0]  %s117, 128, %s119, %s104
        $region20: #{tpu_custom_call.1} parent=15 // pred_fallthru
          _
      $region16: #{tpu_custom_call.1} parent=5 // pred_fallthru
        _
      %p122 = scmp.le.s32.totalorder 1, %s13
      %p123 = scmp.lt.s32.totalorder %s13, 3
      %p124 = pnand %p122, %p123
      %p125 = pneg %p124
      // Predicated region
      $region21: #{tpu_custom_call.1} parent=5 // pred_check
        _
      $region22: #{tpu_custom_call.1} parent=5 // pred_check_branch
        %127 = sbr.rel (%p124) target = $region24
      $region23: #{tpu_custom_call.1} parent=5 // pred_region
        %s128 = ssub.s32 %s13, 1
        %s129 = sand.u32 %s40, 1
        %s130 = scalar_lea.sflag [#allocation4], %s129
        %s131 = sand.u32 %s40, 1
        %s132 = smul.addr %s131, 8
        %s133 = scalar_lea.vmem [#allocation3], %s132
        // Predicated region
        $region25: #{tpu_custom_call.1} parent=23 // pred_check
          %p134 = pneg %p53
        $region26: #{tpu_custom_call.1} parent=23 // pred_check_branch
          %136 = sbr.rel (%p134) target = $region28
        $region27: #{tpu_custom_call.1} parent=23 // pred_region
          %138 = dma.done %s130, 128
        $region28: #{tpu_custom_call.1} parent=23 // pred_fallthru
          _
        %s139 = sand.u32 %s40, 1
        %s140 = scalar_lea.sflag [#allocation4], %s139
        %s141 = sand.u32 %s40, 1
        %s142 = smul.addr %s141, 8
        %s143 = scalar_lea.vmem [#allocation3], %s142
        %p144 = pneg %p53
        %p145 = pneg %p50
        %p146 = pneg %p81
        %p147 = pneg %p78
        %s148 = sand.u32 %s68, 1
        %s149 = scalar_lea.sflag [#allocation5], %s148
        %s150 = sand.u32 %s68, 1
        %s151 = smul.addr %s150, 8
        %s152 = scalar_lea.vmem [#allocation6], %s151
        %s153 = smul.u32 2, %s23
        %s154 = smul.u32 2, %s23
        %v155 = vld [vmem:[%s133] sm:$0xff]
        %v156 = vmul.f32 %v155, %v155
        %v157 = vlaneseq
        %vm158 = vcmp.ge.s32.totalorder %v157, 0
        %vm159 = vcmp.lt.s32.totalorder %v157, 256
        %vm160 = vmand %vm158, %vm159
        %161 = vst.msk [vmem:[#allocation2] ss:$8 sm:$0x3] %vm160, 0.0
        %162 = vst.msk [vmem:[#allocation2] ss:$8 sm:$0x0] %vm160, 0.0
        %164 = vst [vmem:[#allocation1] ss:$2 sm:$0xff] %v156
        %v165 = vld.sshfl [vmem:[#allocation1] sm:$0xff pattern:$0x75316420]
        %v166 = vld.sshfl [vmem:[#allocation1 + $0x8] sm:$0xff pattern:$0x75316420]
        %v167 = vrot.slane %v165, 7
        %v168 = vrot.slane %v166, 7
        %171 = vst [vmem:[#allocation2] sm:$0x1e] %v167
        %172 = vst [vmem:[#allocation2 + $0x8] sm:$0x1e] %v168
        %v173 = vld [vmem:[#allocation2] sm:$0xf]
        %v174 = vld [vmem:[#allocation2 + $0x8] sm:$0xf]
        %v177 = vrot.slane %v174, 4
        %vm178 = vcmask 1043456
        %v179 = vsel %vm178, %v173, %v177
        %v181 = vadd.f32 %v156, %v179
        %v182 = vmul.f32 %v181, 5e-05
        %v183 = vadd.f32 %v182, 1.0
        %v184 = vrsqrt.pop %v183
        %v185 = vmul.f32 %v184, %v183
        %v186 = vmul.f32 %v185, %v184
        %v187 = vmul.f32 0.5, %v186
        %v188 = vsub.f32 1.5, %v187
        %v189 = vmul.f32 %v184, %v188
        %v190 = vmul.f32 %v183, %v189
        %vm191 = vcmp.eq.f32.partialorder %v183, inf
        %v192 = vsel %vm191, %v183, %v190
        %vm193 = vcmp.eq.f32.partialorder %v183, 0.0
        %v194 = vand.u32 %v183, 2147483648
        %v195 = vsel %vm193, %v194, %v192
        %v196 = vmul.f32 %v183, %v195
        %v197 = vrsqrt.pop %v196
        %v198 = vmul.f32 %v197, %v196
        %v199 = vmul.f32 %v198, %v197
        %v200 = vmul.f32 0.5, %v199
        %v201 = vsub.f32 1.5, %v200
        %v202 = vmul.f32 %v197, %v201
        %vm203 = vweird.f32 %v196
        %vm204 = vweird.f32 %v197
        %vm205 = vmor %vm203, %vm204
        %v206 = vsel %vm205, %v197, %v202
        %v207 = vmul.f32 %v155, %v206
        %208 = vst [vmem:[%s152] sm:$0xff] %v207
        %s209 = sand.u32 %s68, 1
        %s210 = scalar_lea.sflag [#allocation5], %s209
        %s211 = sand.u32 %s68, 1
        %s212 = smul.addr %s211, 8
        %s213 = scalar_lea.vmem [#allocation6], %s212
        // Predicated region
        $region29: #{tpu_custom_call.1} parent=23 // pred_check
          %p214 = pneg %p78
        $region30: #{tpu_custom_call.1} parent=23 // pred_check_branch
          %216 = sbr.rel (%p214) target = $region32
        $region31: #{tpu_custom_call.1} parent=23 // pred_region
          %s217 = smul.u32 2, %s23
          %219 = vsyncadd %s210, 0
          %s220 = smul.addr %s22, 2
          %s221 = sadd.s32 %s217, %s220
          %s222 = smul.addr %s221, 4
          %s223 = scalar_lea.hbm %s1, %s222
          %s225 = sshll.u32 %s213, 4
          %s226 = int_to_ptr.vmem [resolvable:$true] %s225
          %s227 = sshll.u32 %s223, 4
          %s228 = int_to_ptr.hbm [resolvable:$true] %s227
          %230 = dma.vmem_to_hbm [thread:$0]  %s226, 128, %s228, %s210
        $region32: #{tpu_custom_call.1} parent=23 // pred_fallthru
          _
      $region24: #{tpu_custom_call.1} parent=5 // pred_fallthru
        _
      %p231 = scmp.le.s32.totalorder 2, %s13
      // Predicated region
      $region33: #{tpu_custom_call.1} parent=5 // pred_check
        %p232 = pneg %p231
      $region34: #{tpu_custom_call.1} parent=5 // pred_check_branch
        %234 = sbr.rel (%p232) target = $region36
      $region35: #{tpu_custom_call.1} parent=5 // pred_region
        %s235 = ssub.s32 %s13, 2
        // Predicated region
        $region37: #{tpu_custom_call.1} parent=35 // pred_check
          %p236 = pneg %p84
        $region38: #{tpu_custom_call.1} parent=35 // pred_check_branch
          %238 = sbr.rel (%p236) target = $region40
        $region39: #{tpu_custom_call.1} parent=35 // pred_region
          %s239 = sand.u32 %s69, 1
          %s240 = scalar_lea.sflag [#allocation5], %s239
          %s241 = sand.u32 %s69, 1
          %s242 = smul.addr %s241, 8
          %s243 = scalar_lea.vmem [#allocation6], %s242
          %245 = dma.done %s240, 128
        $region40: #{tpu_custom_call.1} parent=35 // pred_fallthru
          _
      $region36: #{tpu_custom_call.1} parent=5 // pred_fallthru
        _
    $region6: #{tpu_custom_call.1} parent=1 // loop_footer
      %s17 = sadd.s32 1, %s13
    $region7: #{tpu_custom_call.1} parent=1 // loop_footer_branch
      %12 = sbr.rel target = $region3
    $region8: #{tpu_custom_call.1} parent=1 // loop_exit
      _
    %246 = vsyncpa [#allocation4], 1
    %s247 = scalar_lea.sflag [#allocation4], 1
    %248 = vsyncpa %s247, 1
    %249 = vsyncpa [#allocation5], 1
    %s250 = scalar_lea.sflag [#allocation5], 1
    %251 = vsyncpa %s250, 1

</llo_original>
